<compile_context>
chip_gen: v6e
topology: v6e:2x2x1
jax: 0.10.0
libtpu: 0.0.40
codegen_flags: <defaults>
</compile_context>

<pallas_src>
import math

import jax
import jax.numpy as jnp
from jax.experimental import pallas as pl
from jax.experimental.pallas import tpu as pltpu


def _round_up(n, m):
    return ((n + m - 1) // m) * m


def _make_kernel(dim, k, single_transcendental):
    def kernel(x_ref, freq_ref, phase_ref, o_ref):
        # x_ref:    [TR, k]      f32  (k consecutive timesteps per packed row)
        # freq_ref: [1, k*dim]   f32  (freq table tiled k times)
        # phase_ref:[1, k*dim]   f32  (0.0 on sin lanes, pi/2 on cos lanes)
        # o_ref:    [TR, k*dim]  out_dtype
        width = o_ref.shape[-1]

        # Expand the k per-row timesteps across their dim-wide lane groups with a short
        # static chain of lane-broadcast selects (exact, cheap VPU work).
        x_exp = x_ref[:, 0:1]                                   # [TR, 1]
        if k > 1:
            lane = jax.lax.broadcasted_iota(jnp.int32, (1, width), 1)
            for i in range(1, k):
                x_exp = jnp.where(lane >= i * dim, x_ref[:, i:i + 1], x_exp)

        emb = x_exp * freq_ref[...]                             # [TR, width], exact f32

        if single_transcendental:
            # cos(z) = sin(z + pi/2): one transcendental per element, ~ulp(z) arg error.
            out = jnp.sin(emb + phase_ref[...])
        else:
            # Bit-compatible with the reference: every lane's emb value is consumed by
            # exactly one of sin/cos (no dead-lane waste), at 2 transcendentals/element.
            out = jnp.where(phase_ref[...] == 0.0, jnp.sin(emb), jnp.cos(emb))

        o_ref[...] = out.astype(o_ref.dtype)

    return kernel


def sinusoidal_pos_emb(x, dim, *, out_dtype=jnp.float32, single_transcendental=False,
                       target_block_bytes=8 << 20):
    """x: [B] float timesteps -> [B, dim] embedding (sin | cos), like the PyTorch module."""
    assert dim % 2 == 0, "dim must be even (torch.cat((sin, cos)) needs 2*(dim//2) == dim)"
    assert dim >= 4, "dim must be >= 4 (half_dim - 1 appears in a denominator)"

    x = jnp.asarray(x, dtype=jnp.float32)
    (b,) = x.shape
    half = dim // 2

    # Packing factor so the output lane axis is a multiple of 128.
    k = 128 // math.gcd(dim, 128)
    width = k * dim

    # Host-built per-lane tables (computed once, tiny, constant index_map in the grid).
    scale = math.log(10000.0) / (half - 1)
    freq_half = jnp.exp(jnp.arange(half, dtype=jnp.float32) * (-scale))
    freq_row = jnp.tile(jnp.concatenate([freq_half, freq_half]), (k,)).reshape(1, width)
    phase_row = jnp.tile(
        jnp.concatenate([jnp.zeros((half,), jnp.float32),
                         jnp.full((half,), math.pi / 2.0, jnp.float32)]),
        (k,)).reshape(1, width)

    # Minimal padding: packed rows (= B/k) must be a multiple of 8 sublanes.
    align = 8 * k
    b_pad = _round_up(b, align)
    if b_pad != b:
        x = jnp.pad(x, (0, b_pad - b))
    rows = b_pad // k
    x2 = x.reshape(rows, k)

    # Row tile: ~target_block_bytes per output block (double-buffered stays well under
    # VMEM on all gens); prefer >= 2 grid steps when possible so v7x megacore is fed.
    itemsize = jnp.dtype(out_dtype).itemsize
    row_bytes = width * itemsize
    cap = max(8, (target_block_bytes // row_bytes) // 8 * 8)
    if rows <= cap:
        tr = rows // 2 if (rows >= 16 and rows % 16 == 0) else rows
    else:
        tr = cap
    grid = (pl.cdiv(rows, tr),)   # edge block (if any) is clamped by Pallas on store

    out_blk = tr * width * itemsize
    x_blk = tr * k * 4
    const_bytes = 2 * width * 4
    vmem_limit = int(min(64 << 20,
                         max(16 << 20, 2 * (out_blk + x_blk) + 2 * const_bytes + (2 << 20))))

    packed = pl.pallas_call(
        _make_kernel(dim, k, single_transcendental),
        out_shape=jax.ShapeDtypeStruct((rows, width), out_dtype),
        grid_spec=pltpu.PrefetchScalarGridSpec(
            num_scalar_prefetch=0,
            grid=grid,
            in_specs=[
                pl.BlockSpec((tr, k), lambda i: (i, 0)),        # packed timesteps
                pl.BlockSpec((1, width), lambda i: (0, 0)),     # tiled freq table
                pl.BlockSpec((1, width), lambda i: (0, 0)),     # per-lane phase (0 | pi/2)
            ],
            out_specs=pl.BlockSpec((tr, width), lambda i: (i, 0)),
        ),
        compiler_params=pltpu.CompilerParams(
            dimension_semantics=("parallel",),                  # v7x: shard rows across 2 TCs
            vmem_limit_bytes=vmem_limit,
        ),
    )(x2, freq_row, phase_row)

    out = packed.reshape(b_pad, dim)        # row-major reinterpretation: free
    return out[:b] if b_pad != b else out   # slice only when padding actually happened


def _reference(x, dim):
    """Pure-JAX reference mirroring the PyTorch forward exactly."""
    x = jnp.asarray(x, dtype=jnp.float32)
    half_dim = dim // 2
    emb = math.log(10000.0) / (half_dim - 1)
    emb = jnp.exp(jnp.arange(half_dim, dtype=jnp.float32) * -emb)
    emb = x[:, None] * emb[None, :]
    return jnp.concatenate([jnp.sin(emb), jnp.cos(emb)], axis=-1)


if __name__ == "__main__":
    key = jax.random.PRNGKey(0)

    # Small shape consistent with the module: a batch of diffusion timesteps.
    B, DIM = 8, 32                       # k=4 -> packed width 128; exercises pad + slice path
    x = jax.random.uniform(key, (B,), dtype=jnp.float32, minval=0.0, maxval=1000.0)
    out = jax.block_until_ready(sinusoidal_pos_emb(x, DIM))
    ref = _reference(x, DIM)
    assert out.shape == (B, DIM), out.shape
    assert jnp.allclose(out, ref, atol=1e-5, rtol=1e-5), float(jnp.max(jnp.abs(out - ref)))

    # No-padding path with a multi-step ("parallel") grid: dim=64 -> k=2, align=16 divides 256.
    B2, DIM2 = 256, 64
    x2 = jax.random.uniform(jax.random.PRNGKey(1), (B2,), dtype=jnp.float32,
                            minval=0.0, maxval=1000.0)
    out2 = jax.block_until_ready(sinusoidal_pos_emb(x2, DIM2))
    ref2 = _reference(x2, DIM2)
    assert out2.shape == (B2, DIM2), out2.shape
    assert jnp.allclose(out2, ref2, atol=1e-5, rtol=1e-5), float(jnp.max(jnp.abs(out2 - ref2)))

    # Optional single-transcendental mode (cos via sin(z + pi/2)): half the sin/cos work;
    # not bit-exact for large arguments (~ulp(z) ~ 6e-5 at z~1e3), so compare loosely.
    out3 = jax.block_until_ready(sinusoidal_pos_emb(x2, DIM2, single_transcendental=True))
    assert jnp.allclose(out3, ref2, atol=1e-3, rtol=1e-3), float(jnp.max(jnp.abs(out3 - ref2)))

    print("KERNEL_OK")
</pallas_src>

<mosaic_0001>
module attributes {stable_mosaic.version = 11 : i64} {
  func.func @kernel(%arg0: i32, %arg1: memref<8x4xf32, #tpu.memory_space<vmem>>, %arg2: memref<1x128xf32, #tpu.memory_space<vmem>>, %arg3: memref<1x128xf32, #tpu.memory_space<vmem>>, %arg4: memref<8x128xf32, #tpu.memory_space<vmem>>) attributes {dimension_semantics = [#tpu.dimension_semantics<parallel>], iteration_bounds = array<i64: 1>, scalar_prefetch = 0 : i64, scratch_operands = 0 : i64, tpu.core_type = #tpu.core_type<tc>, window_params = [{transform_indices = @transform_0, window_bounds = array<i64: 8, 4>}, {pipeline_mode = #tpu.pipeline_mode<synchronous>, transform_indices = @transform_1, window_bounds = array<i64: 1, 128>}, {pipeline_mode = #tpu.pipeline_mode<synchronous>, transform_indices = @transform_2, window_bounds = array<i64: 1, 128>}, {transform_indices = @transform_3, window_bounds = array<i64: 8, 128>}]} {
    %c0 = arith.constant 0 : index
    %c0_0 = arith.constant 0 : index
    %0 = vector.load %arg1[%c0, %c0_0] : memref<8x4xf32, #tpu.memory_space<vmem>>, vector<8x1xf32>
    %1 = tpu.iota {dimensions = array<i32: 1>} : vector<1x128xi32>
    %c32_i32 = arith.constant 32 : i32
    %2 = vector.broadcast %c32_i32 : i32 to vector<1x128xi32>
    %3 = arith.cmpi sge, %1, %2 : vector<1x128xi32>
    %c0_1 = arith.constant 0 : index
    %c1 = arith.constant 1 : index
    %4 = vector.load %arg1[%c0_1, %c1] : memref<8x4xf32, #tpu.memory_space<vmem>>, vector<8x1xf32>
    %5 = vector.shape_cast %3 : vector<1x128xi1> to vector<1x128xi1>
    %6 = vector.broadcast %5 : vector<1x128xi1> to vector<8x128xi1>
    %7 = vector.shape_cast %4 : vector<8x1xf32> to vector<8x1xf32>
    %8 = vector.broadcast %7 : vector<8x1xf32> to vector<8x128xf32>
    %9 = vector.shape_cast %0 : vector<8x1xf32> to vector<8x1xf32>
    %10 = vector.broadcast %9 : vector<8x1xf32> to vector<8x128xf32>
    %11 = arith.select %6, %8, %10 : vector<8x128xi1>, vector<8x128xf32>
    %c64_i32 = arith.constant 64 : i32
    %12 = vector.broadcast %c64_i32 : i32 to vector<1x128xi32>
    %13 = arith.cmpi sge, %1, %12 : vector<1x128xi32>
    %c0_2 = arith.constant 0 : index
    %c2 = arith.constant 2 : index
    %14 = vector.load %arg1[%c0_2, %c2] : memref<8x4xf32, #tpu.memory_space<vmem>>, vector<8x1xf32>
    %15 = vector.shape_cast %13 : vector<1x128xi1> to vector<1x128xi1>
    %16 = vector.broadcast %15 : vector<1x128xi1> to vector<8x128xi1>
    %17 = vector.shape_cast %14 : vector<8x1xf32> to vector<8x1xf32>
    %18 = vector.broadcast %17 : vector<8x1xf32> to vector<8x128xf32>
    %19 = arith.select %16, %18, %11 : vector<8x128xi1>, vector<8x128xf32>
    %c96_i32 = arith.constant 96 : i32
    %20 = vector.broadcast %c96_i32 : i32 to vector<1x128xi32>
    %21 = arith.cmpi sge, %1, %20 : vector<1x128xi32>
    %c0_3 = arith.constant 0 : index
    %c3 = arith.constant 3 : index
    %22 = vector.load %arg1[%c0_3, %c3] : memref<8x4xf32, #tpu.memory_space<vmem>>, vector<8x1xf32>
    %23 = vector.shape_cast %21 : vector<1x128xi1> to vector<1x128xi1>
    %24 = vector.broadcast %23 : vector<1x128xi1> to vector<8x128xi1>
    %25 = vector.shape_cast %22 : vector<8x1xf32> to vector<8x1xf32>
    %26 = vector.broadcast %25 : vector<8x1xf32> to vector<8x128xf32>
    %27 = arith.select %24, %26, %19 : vector<8x128xi1>, vector<8x128xf32>
    %c0_4 = arith.constant 0 : index
    %c0_5 = arith.constant 0 : index
    %28 = vector.load %arg2[%c0_4, %c0_5] : memref<1x128xf32, #tpu.memory_space<vmem>>, vector<1x128xf32>
    %29 = vector.broadcast %28 : vector<1x128xf32> to vector<8x128xf32>
    %30 = arith.mulf %27, %29 : vector<8x128xf32>
    %c0_6 = arith.constant 0 : index
    %c0_7 = arith.constant 0 : index
    %31 = vector.load %arg3[%c0_6, %c0_7] : memref<1x128xf32, #tpu.memory_space<vmem>>, vector<1x128xf32>
    %cst = arith.constant 0.000000e+00 : f32
    %32 = vector.broadcast %cst : f32 to vector<1x128xf32>
    %33 = arith.cmpf oeq, %31, %32 : vector<1x128xf32>
    %34 = math.sin %30 : vector<8x128xf32>
    %35 = math.cos %30 : vector<8x128xf32>
    %36 = vector.shape_cast %33 : vector<1x128xi1> to vector<1x128xi1>
    %37 = vector.broadcast %36 : vector<1x128xi1> to vector<8x128xi1>
    %38 = arith.select %37, %34, %35 : vector<8x128xi1>, vector<8x128xf32>
    %c0_8 = arith.constant 0 : index
    %c0_9 = arith.constant 0 : index
    %39 = vector.load %arg4[%c0_8, %c0_9] : memref<8x128xf32, #tpu.memory_space<vmem>>, vector<8x128xf32>
    tpu.vector_store %arg4[%c0_8, %c0_9], %38 {strides = array<i32>} : memref<8x128xf32, #tpu.memory_space<vmem>>, vector<8x128xf32>,
    return
  }
  func.func @transform_0(%arg0: i32) -> (i32, i32) {
    %c0_i32 = arith.constant 0 : i32
    %c0_i32_0 = arith.constant 0 : i32
    return %arg0, %c0_i32 : i32, i32
  }
  func.func @transform_1(%arg0: i32) -> (i32, i32) {
    %c0_i32 = arith.constant 0 : i32
    %c0_i32_0 = arith.constant 0 : i32
    %c0_i32_1 = arith.constant 0 : i32
    return %c0_i32, %c0_i32_0 : i32, i32
  }
  func.func @transform_2(%arg0: i32) -> (i32, i32) {
    %c0_i32 = arith.constant 0 : i32
    %c0_i32_0 = arith.constant 0 : i32
    %c0_i32_1 = arith.constant 0 : i32
    return %c0_i32, %c0_i32_0 : i32, i32
  }
  func.func @transform_3(%arg0: i32) -> (i32, i32) {
    %c0_i32 = arith.constant 0 : i32
    %c0_i32_0 = arith.constant 0 : i32
    return %arg0, %c0_i32 : i32, i32
  }
}

</mosaic_0001>

<llo_original>
// kernel: tpu_custom_call.1
$region0: #{tpu_custom_call.1}
  #allocation0 [shape = 'u32[]', space=smem, size = 0x4, offset = 0x4, fixed_abs, tag = 'smem constant byte address 0x4 - core index']
  #allocation1 [shape = 'u32[144,128]{1,0:T(1,128)}', space=vmem, size = 0x12000, scoped, tag = 'internal scratch']
  %s0 = inlined_call_operand.vmem [shape: f32[8,4], index: 0, kind: input, shape index: {}]
  %s1 = inlined_call_operand.vmem [shape: f32[1,128], index: 1, kind: input, shape index: {}]
  %s2 = inlined_call_operand.vmem [shape: f32[1,128], index: 2, kind: input, shape index: {}]
  %s3 = inlined_call_operand.hbm [shape: f32[8,128], index: 3, kind: output, shape index: {}]
  %s4 = sld [smem:[#allocation0]]
  $region22: #{tpu_custom_call.1} parent=0
    _
  %s6 = ssub.s32 1, %s4
  %s7 = scalar_select 0, %s6, %s4
  $region1: #{tpu_custom_call.1} parent=0
    #allocation2 [shape = 'u8[4096]{0}', space=vmem, size = 0x1000, scoped, tag = 'output window, operand 0, single buffered']
    #allocation3 [shape = 's32[1]{0}', space=sflag, size = 0x4, scoped, tag = 'scoped memory for tpu_custom_call.1']
    %8 = vsyncpa [#allocation3], 0
    // Predicated region
    $region2: #{tpu_custom_call.1} parent=1 // pred_check
      _
    $region3: #{tpu_custom_call.1} parent=1 // pred_check_branch
      %10 = sbr.rel (0) target = $region5
    $region4: #{tpu_custom_call.1} parent=1 // pred_region
      _
    $region5: #{tpu_custom_call.1} parent=1 // pred_fallthru
      _
    // Predicated region
    $region6: #{tpu_custom_call.1} parent=1 // pred_check
      _
    $region7: #{tpu_custom_call.1} parent=1 // pred_check_branch
      %12 = sbr.rel (0) target = $region9
    $region8: #{tpu_custom_call.1} parent=1 // pred_region
      _
    $region9: #{tpu_custom_call.1} parent=1 // pred_fallthru
      _
    // Predicated region
    $region10: #{tpu_custom_call.1} parent=1 // pred_check
      _
    $region11: #{tpu_custom_call.1} parent=1 // pred_check_branch
      %14 = sbr.rel (0) target = $region13
    $region12: #{tpu_custom_call.1} parent=1 // pred_region
      _
    $region13: #{tpu_custom_call.1} parent=1 // pred_fallthru
      _
    %v15 = vld [vmem:[%s0] sm:$0xff]
    %v16 = vlaneseq
    %v17 = vand.u32 %v16, 127
    %vm18 = vcmp.ge.s32.totalorder %v17, 32
    %v19 = vsel %vm18, 1, 0
    %vm20 = vcmp.eq.s32.totalorder %v19, 1
    %22 = vset.pattern.permute.xlu0 1
    %23 = vperm.xlu0 %22, %v15
    %v24 = vpop.permute.xlu0 %23
    %26 = vset.pattern.permute.xlu0 0
    %27 = vperm.xlu0 %26, %v15
    %v28 = vpop.permute.xlu0 %27
    %v30 = vsel %vm20, %v24, %v28
    %vm31 = vcmp.ge.s32.totalorder %v17, 64
    %v32 = vsel %vm31, 1, 0
    %vm33 = vcmp.eq.s32.totalorder %v32, 1
    %34 = vset.pattern.permute.xlu0 2
    %35 = vperm.xlu0 %34, %v15
    %v36 = vpop.permute.xlu0 %35
    %v38 = vsel %vm33, %v36, %v30
    %vm39 = vcmp.ge.s32.totalorder %v17, 96
    %v40 = vsel %vm39, 1, 0
    %vm41 = vcmp.eq.s32.totalorder %v40, 1
    %42 = vset.pattern.permute.xlu0 3
    %43 = vperm.xlu0 %42, %v15
    %v44 = vpop.permute.xlu0 %43
    %v46 = vsel %vm41, %v44, %v38
    %v47 = vld [vmem:[%s1] sm:$0x1]
    %v49 = vlaneseq
    %v50 = vshrl.u32 %v49, 7
    %v51 = vsub.s32 0, %v50
    %v52 = vrot.slane %v47, %v51
    %v54 = vmul.f32 %v46, %v52
    %v55 = vld [vmem:[%s2] sm:$0x1]
    %vm56 = vcmp.eq.f32.partialorder %v55, 0.0
    %v57 = vand.u32 2147483647, %v54
    %vm58 = vcmp.le.f32.partialorder %v57, 0.7853982
    %vm59 = vcmp.lt.s32.totalorder %v54, 0
    %v60 = vand.u32 %v54, 2139095040
    %v61 = vshrl.u32 %v60, 23
    %v62 = vsub.s32 %v61, 127
    %v63 = vand.u32 2147483647, %v54
    %v64 = vand.u32 %v63, 8388607
    %v65 = vor.u32 %v64, 8388608
    %v66 = vsub.s32 0, %v65
    %v67 = vadd.s32 %v62, 1
    %vm68 = vcmp.gt.s32.totalorder %v67, 0
    %v69 = vsel %vm68, %v67, 0
    %v70 = vshrl.u32 %v69, 5
    %v71 = vand.u32 %v69, 31
    %v72 = vsub.s32 32, %v71
    %v73 = vshrl.u32 683565275, %v72
    %v74 = vshll.u32 683565275, %v71
    %v75 = vshrl.u32 2475754826, %v72
    %v76 = vor.u32 %v74, %v75
    %v77 = vshll.u32 2475754826, %v71
    %v78 = vshrl.u32 2131351028, %v72
    %v79 = vor.u32 %v77, %v78
    %v80 = vshll.u32 2131351028, %v71
    %v81 = vshrl.u32 2102212464, %v72
    %v82 = vor.u32 %v80, %v81
    %v83 = vshll.u32 2102212464, %v71
    %v84 = vshrl.u32 920167782, %v72
    %v85 = vor.u32 %v83, %v84
    %v86 = vshll.u32 920167782, %v71
    %v87 = vshrl.u32 1326507024, %v72
    %v88 = vor.u32 %v86, %v87
    %vm89 = vcmp.lt.s32.totalorder %v70, 1
    %vm90 = vcmp.lt.s32.totalorder %v70, 2
    %vm91 = vcmp.lt.s32.totalorder %v70, 3
    %vm92 = vcmp.lt.s32.totalorder %v70, 4
    %v93 = vsel %vm89, %v73, %v76
    %v94 = vsel %vm92, %v82, 2102212464
    %v95 = vsel %vm91, %v79, %v94
    %v96 = vsel %vm90, %v93, %v95
    %v97 = vsel %vm89, %v76, %v79
    %v98 = vsel %vm92, %v85, 920167782
    %v99 = vsel %vm91, %v82, %v98
    %v100 = vsel %vm90, %v97, %v99
    %v101 = vsel %vm89, %v79, %v82
    %v102 = vsel %vm92, %v88, 1326507024
    %v103 = vsel %vm91, %v85, %v102
    %v104 = vsel %vm90, %v101, %v103
    %v105 = vshll.u32 %v65, 8
    %v106 = vmul.u32.u64.compose %v105, %v104
    %v107 = vextract.low.u32 %v106
    %v108 = vextract.high.u32 %v106
    %v109 = vmul.u32.u64.compose %v105, %v100
    %v110 = vextract.low.u32 %v109
    %v111 = vextract.high.u32 %v109
    %v112 = vmul.u32 %v105, %v96
    %v113 = vadd.s32 %v108, %v110
    %vm114 = vc.u32 %v108, %v110
    %v115 = vadd.s32 %v111, 1
    %v116 = vsel %vm114, %v115, %v111
    %v117 = vadd.s32 %v112, %v116
    %v118 = vadd.s32 %v117, 536870912
    %v119 = vshrl.u32 %v118, 30
    %v120 = vshll.u32 %v119, 30
    %v121 = vsub.s32 %v117, %v120
    %vm122 = vcmp.lt.s32.totalorder %v121, 0
    %v123 = vsub.s32 0, %v121
    %v124 = vsel %vm122, %v123, %v121
    %v125 = vclz %v124
    %v126 = vsub.s32 %v125, 2
    %vm127 = vcmp.gt.s32.totalorder 0, %v126
    %v128 = vsel %vm127, 0, %v126
    %v129 = vsub.s32 32, %v128
    %v130 = vshll.u32 %v121, %v128
    %v131 = vshrl.u32 %v113, %v129
    %v132 = vor.u32 %v130, %v131
    %v133 = vsub.s32 4294967266, %v128
    %v134 = vadd.s32 %v133, 127
    %v135 = vshll.u32 %v134, 23
    %v136 = vor.u32 4788187, %v135
    %v137 = vand.u32 2147483647, %v136
    %v139 = vcvt.s32.f32 %v132
    %v140 = vmul.f32 %v139, %v137
    %v141 = vxor.u32 %v140, 2147483648
    %v142 = vsel %vm59, %v141, %v140
    %v143 = vsub.s32 4, %v119
    %v144 = vsel %vm59, %v143, %v119
    %v145 = vsel %vm58, %v54, %v142
    %v146 = vsel %vm58, 0, %v144
    %v147 = vcosq.f32.pop %v145
    %v148 = vsinq.f32.pop %v145
    %vm149 = vweird.f32 %v54
    %v150 = vadd.s32 %v146, 3
    %v151 = vand.u32 %v150, 3
    %vm152 = vcmp.lt.s32.totalorder %v151, 2
    %vm153 = vcmp.eq.s32.totalorder %v151, 0
    %v154 = vxor.u32 %v148, 2147483648
    %v155 = vsel %vm153, %v147, %v154
    %vm156 = vcmp.eq.s32.totalorder %v151, 2
    %v157 = vxor.u32 %v147, 2147483648
    %v158 = vsel %vm156, %v157, %v148
    %v159 = vsel %vm152, %v155, %v158
    %v160 = vsel %vm149, nan, %v159
    %v161 = vand.u32 2147483647, %v54
    %vm162 = vcmp.le.f32.partialorder %v161, 0.7853982
    %vm163 = vcmp.lt.s32.totalorder %v54, 0
    %v164 = vand.u32 %v54, 2139095040
    %v165 = vshrl.u32 %v164, 23
    %v166 = vsub.s32 %v165, 127
    %v167 = vand.u32 2147483647, %v54
    %v168 = vand.u32 %v167, 8388607
    %v169 = vor.u32 %v168, 8388608
    %v170 = vsub.s32 0, %v169
    %v171 = vadd.s32 %v166, 1
    %vm172 = vcmp.gt.s32.totalorder %v171, 0
    %v173 = vsel %vm172, %v171, 0
    %v174 = vshrl.u32 %v173, 5
    %v175 = vand.u32 %v173, 31
    %v176 = vsub.s32 32, %v175
    %v177 = vshrl.u32 683565275, %v176
    %v178 = vshll.u32 683565275, %v175
    %v179 = vshrl.u32 2475754826, %v176
    %v180 = vor.u32 %v178, %v179
    %v181 = vshll.u32 2475754826, %v175
    %v182 = vshrl.u32 2131351028, %v176
    %v183 = vor.u32 %v181, %v182
    %v184 = vshll.u32 2131351028, %v175
    %v185 = vshrl.u32 2102212464, %v176
    %v186 = vor.u32 %v184, %v185
    %v187 = vshll.u32 2102212464, %v175
    %v188 = vshrl.u32 920167782, %v176
    %v189 = vor.u32 %v187, %v188
    %v190 = vshll.u32 920167782, %v175
    %v191 = vshrl.u32 1326507024, %v176
    %v192 = vor.u32 %v190, %v191
    %vm193 = vcmp.lt.s32.totalorder %v174, 1
    %vm194 = vcmp.lt.s32.totalorder %v174, 2
    %vm195 = vcmp.lt.s32.totalorder %v174, 3
    %vm196 = vcmp.lt.s32.totalorder %v174, 4
    %v197 = vsel %vm193, %v177, %v180
    %v198 = vsel %vm196, %v186, 2102212464
    %v199 = vsel %vm195, %v183, %v198
    %v200 = vsel %vm194, %v197, %v199
    %v201 = vsel %vm193, %v180, %v183
    %v202 = vsel %vm196, %v189, 920167782
    %v203 = vsel %vm195, %v186, %v202
    %v204 = vsel %vm194, %v201, %v203
    %v205 = vsel %vm193, %v183, %v186
    %v206 = vsel %vm196, %v192, 1326507024
    %v207 = vsel %vm195, %v189, %v206
    %v208 = vsel %vm194, %v205, %v207
    %v209 = vshll.u32 %v169, 8
    %v210 = vmul.u32.u64.compose %v209, %v208
    %v211 = vextract.low.u32 %v210
    %v212 = vextract.high.u32 %v210
    %v213 = vmul.u32.u64.compose %v209, %v204
    %v214 = vextract.low.u32 %v213
    %v215 = vextract.high.u32 %v213
    %v216 = vmul.u32 %v209, %v200
    %v217 = vadd.s32 %v212, %v214
    %vm218 = vc.u32 %v212, %v214
    %v219 = vadd.s32 %v215, 1
    %v220 = vsel %vm218, %v219, %v215
    %v221 = vadd.s32 %v216, %v220
    %v222 = vadd.s32 %v221, 536870912
    %v223 = vshrl.u32 %v222, 30
    %v224 = vshll.u32 %v223, 30
    %v225 = vsub.s32 %v221, %v224
    %vm226 = vcmp.lt.s32.totalorder %v225, 0
    %v227 = vsub.s32 0, %v225
    %v228 = vsel %vm226, %v227, %v225
    %v229 = vclz %v228
    %v230 = vsub.s32 %v229, 2
    %vm231 = vcmp.gt.s32.totalorder 0, %v230
    %v232 = vsel %vm231, 0, %v230
    %v233 = vsub.s32 32, %v232
    %v234 = vshll.u32 %v225, %v232
    %v235 = vshrl.u32 %v217, %v233
    %v236 = vor.u32 %v234, %v235
    %v237 = vsub.s32 4294967266, %v232
    %v238 = vadd.s32 %v237, 127
    %v239 = vshll.u32 %v238, 23
    %v240 = vor.u32 4788187, %v239
    %v241 = vand.u32 2147483647, %v240
    %v243 = vcvt.s32.f32 %v236
    %v244 = vmul.f32 %v243, %v241
    %v245 = vxor.u32 %v244, 2147483648
    %v246 = vsel %vm163, %v245, %v244
    %v247 = vsub.s32 4, %v223
    %v248 = vsel %vm163, %v247, %v223
    %v249 = vsel %vm162, %v54, %v246
    %v250 = vsel %vm162, 0, %v248
    %v251 = vcosq.f32.pop %v249
    %v252 = vsinq.f32.pop %v249
    %vm253 = vweird.f32 %v54
    %v254 = vand.u32 %v250, 3
    %vm255 = vcmp.lt.s32.totalorder %v254, 2
    %vm256 = vcmp.eq.s32.totalorder %v254, 0
    %v257 = vxor.u32 %v252, 2147483648
    %v258 = vsel %vm256, %v251, %v257
    %vm259 = vcmp.eq.s32.totalorder %v254, 2
    %v260 = vxor.u32 %v251, 2147483648
    %v261 = vsel %vm259, %v260, %v252
    %v262 = vsel %vm255, %v258, %v261
    %v263 = vsel %vm253, nan, %v262
    %v264 = vsel %vm56, 1, 0
    %v265 = vlaneseq
    %v266 = vshrl.u32 %v265, 7
    %v267 = vsub.s32 0, %v266
    %v268 = vrot.slane %v264, %v267
    %vm269 = vcmp.eq.s32.totalorder %v268, 1
    %v270 = vsel %vm269, %v160, %v263
    %271 = vst [vmem:[#allocation2] sm:$0xff] %v270
    // Predicated region
    $region14: #{tpu_custom_call.1} parent=1 // pred_check
      _
    $region15: #{tpu_custom_call.1} parent=1 // pred_check_branch
      %273 = sbr.rel (0) target = $region17
    $region16: #{tpu_custom_call.1} parent=1 // pred_region
      %s275 = ssub.s32 128, 128
      %276 = vsyncadd [#allocation3], %s275
      %s278 = sshll.u32 [#allocation2], 4
      %s279 = int_to_ptr.vmem [resolvable:$true] %s278
      %281 = dma.vmem_to_hbm [thread:$0]  %s279, 128, %s3, [#allocation3]
    $region17: #{tpu_custom_call.1} parent=1 // pred_fallthru
      _
    // Predicated region
    $region18: #{tpu_custom_call.1} parent=1 // pred_check
      _
    $region19: #{tpu_custom_call.1} parent=1 // pred_check_branch
      %283 = sbr.rel (0) target = $region21
    $region20: #{tpu_custom_call.1} parent=1 // pred_region
      %284 = dma.done [#allocation3], 128
    $region21: #{tpu_custom_call.1} parent=1 // pred_fallthru
      _
    %285 = vsyncpa [#allocation3], 1

</llo_original>
